<compile_context>
chip_gen: v6e
topology: v6e:2x2x1
jax: 0.10.0
libtpu: 0.0.40
codegen_flags: <defaults>
</compile_context>

<pallas_src>
import functools
import math

import jax
import jax.numpy as jnp
from jax.experimental import pallas as pl
from jax.experimental.pallas import tpu as pltpu


# ----------------------------- Pallas kernels -------------------------------

def _embed_kernel(x_ref, w_ref, b_ref, pos_ref, type_ref, o_ref):
    """Patch-embed GEMM with pos/type embedding adds fused into the epilogue."""
    _, B, NP, K = x_ref.shape
    E = w_ref.shape[1]
    y = jnp.dot(x_ref[0].reshape(B * NP, K), w_ref[...],
                preferred_element_type=jnp.float32)
    y = y.reshape(B, NP, E) + b_ref[...] + pos_ref[0] + type_ref[0]
    o_ref[0] = y.astype(o_ref.dtype)


def pallas_patch_embed(x_stack, w, b, pos_embed, type_embed):
    NI, B, NP, K = x_stack.shape
    E = w.shape[1]
    return pl.pallas_call(
        _embed_kernel,
        out_shape=jax.ShapeDtypeStruct((NI, B, NP, E), jnp.float32),
        grid=(NI,),
        in_specs=[
            pl.BlockSpec((1, B, NP, K), lambda i: (i, 0, 0, 0)),
            pl.BlockSpec((K, E), lambda i: (0, 0)),       # weights resident
            pl.BlockSpec((1, E), lambda i: (0, 0)),
            pl.BlockSpec((1, NP, E), lambda i: (0, 0, 0)),
            pl.BlockSpec((1, 1, E), lambda i: (i, 0, 0)),  # per-image type embed
        ],
        out_specs=pl.BlockSpec((1, B, NP, E), lambda i: (i, 0, 0, 0)),
        compiler_params=pltpu.CompilerParams(dimension_semantics=("parallel",)),
    )(x_stack, w, b, pos_embed, type_embed)


def _linear_kernel(x_ref, w_ref, b_ref, o_ref):
    o_ref[...] = (jnp.dot(x_ref[...], w_ref[...],
                          preferred_element_type=jnp.float32)
                  + b_ref[...]).astype(o_ref.dtype)


def pallas_linear(x, w, b, *, block_m=512):
    """y = x @ w + b, tiled over rows (weights stay resident)."""
    M, K = x.shape
    N = w.shape[1]
    if M % block_m != 0:          # tiny / ragged M: single whole-array block
        block_m = M
    return pl.pallas_call(
        _linear_kernel,
        out_shape=jax.ShapeDtypeStruct((M, N), jnp.float32),
        grid=(M // block_m,),
        in_specs=[pl.BlockSpec((block_m, K), lambda i: (i, 0)),
                  pl.BlockSpec((K, N), lambda i: (0, 0)),
                  pl.BlockSpec((1, N), lambda i: (0, 0))],
        out_specs=pl.BlockSpec((block_m, N), lambda i: (i, 0)),
        compiler_params=pltpu.CompilerParams(dimension_semantics=("parallel",)),
    )(x, w, b)


def _layer_norm(y, w, b):
    mu = jnp.mean(y, axis=-1, keepdims=True)
    var = jnp.mean(jnp.square(y - mu), axis=-1, keepdims=True)
    return (y - mu) * jax.lax.rsqrt(var + 1e-5) * w + b


def _encoder_layer_math(x3, wqkv, bqkv, wo, bo, ln1w, ln1b, w1, b1, w2, b2,
                        ln2w, ln2b, num_heads):
    """One post-norm TransformerEncoderLayer (eval mode) on a (B, S, E) slab.

    GEMMs run on the folded (B*S, E) slab; attention is batched over B with
    3-D einsums per head.  All math in f32.
    """
    B, S, E = x3.shape
    M = B * S
    hd = E // num_heads
    scale = 1.0 / math.sqrt(hd)

    x2 = x3.reshape(M, E)
    qkv = jnp.dot(x2, wqkv, preferred_element_type=jnp.float32) + bqkv  # (M,3E)
    q = (qkv[:, :E] * scale).reshape(B, S, E)
    k = qkv[:, E:2 * E].reshape(B, S, E)
    v = qkv[:, 2 * E:].reshape(B, S, E)

    heads = []
    for h in range(num_heads):                         # static, small
        sl = slice(h * hd, (h + 1) * hd)
        s = jnp.einsum('bqd,bkd->bqk', q[..., sl], k[..., sl],
                       preferred_element_type=jnp.float32)      # (B,S,S)
        s = s - jnp.max(s, axis=-1, keepdims=True)
        p = jnp.exp(s)
        inv = pl.reciprocal(jnp.sum(p, axis=-1, keepdims=True), approx=False)
        p = p * inv
        heads.append(jnp.einsum('bqk,bkd->bqd', p, v[..., sl],
                                preferred_element_type=jnp.float32))
    attn = jnp.concatenate(heads, axis=-1).reshape(M, E)
    attn = jnp.dot(attn, wo, preferred_element_type=jnp.float32) + bo

    h1 = _layer_norm(x2 + attn, ln1w, ln1b)            # post-norm (PyTorch default)
    f = jnp.maximum(jnp.dot(h1, w1, preferred_element_type=jnp.float32) + b1, 0.0)
    f = jnp.dot(f, w2, preferred_element_type=jnp.float32) + b2
    h2 = _layer_norm(h1 + f, ln2w, ln2b)
    return h2.reshape(B, S, E)


def _transformer_kernel(num_heads, x_ref, wqkv_ref, bqkv_ref, wo_ref, bo_ref,
                        ln1w_ref, ln1b_ref, w1_ref, b1_ref, w2_ref, b2_ref,
                        ln2w_ref, ln2b_ref, o_ref):
    """Grid axis = layer index.  The activation slab lives in the (resident)
    output VMEM buffer across all layers; HBM write-back happens once."""
    layer = pl.program_id(0)

    @pl.when(layer == 0)
    def _():
        o_ref[...] = x_ref[...]

    y = _encoder_layer_math(
        o_ref[...], wqkv_ref[0], bqkv_ref[0], wo_ref[0], bo_ref[0],
        ln1w_ref[0], ln1b_ref[0], w1_ref[0], b1_ref[0], w2_ref[0], b2_ref[0],
        ln2w_ref[0], ln2b_ref[0], num_heads)
    o_ref[...] = y.astype(o_ref.dtype)


_LAYER_NAMES = ('wqkv', 'bqkv', 'wo', 'bo', 'ln1w', 'ln1b',
                'w1', 'b1', 'w2', 'b2', 'ln2w', 'ln2b')


def pallas_transformer(x, layers, num_heads):
    """All `depth` encoder layers in a single pallas_call."""
    B, S, E = x.shape
    depth = layers['wqkv'].shape[0]
    ws = [layers[n] for n in _LAYER_NAMES]              # each (depth, r, c)
    w_specs = [pl.BlockSpec((1,) + w.shape[1:], lambda l: (l, 0, 0)) for w in ws]
    return pl.pallas_call(
        functools.partial(_transformer_kernel, num_heads),
        out_shape=jax.ShapeDtypeStruct((B, S, E), jnp.float32),
        grid=(depth,),
        in_specs=[pl.BlockSpec((B, S, E), lambda l: (0, 0, 0))] + w_specs,
        out_specs=pl.BlockSpec((B, S, E), lambda l: (0, 0, 0)),
        compiler_params=pltpu.CompilerParams(dimension_semantics=("arbitrary",)),
    )(x, *ws)


# -------------------------------- glue / model -------------------------------

def extract_patches(x, p):
    # x: (B, C, H, W) -> (B, num_patches, C*p*p); patches row-major over
    # (H/p, W/p), pixels in (C, ph, pw) order = Conv2d weight flattening.
    B, C, H, W = x.shape
    hp, wp = H // p, W // p
    x = x.reshape(B, C, hp, p, wp, p)
    x = x.transpose(0, 2, 4, 1, 3, 5)          # (B, hp, wp, C, p, p)
    return x.reshape(B, hp * wp, C * p * p)


def image_transformer_forward(x_list, params, cfg):
    p, E, nh = cfg['patch_size'], cfg['embed_dim'], cfg['num_heads']
    B, C, H, W = x_list[0].shape
    NP = (H // p) * (W // p)
    NI = len(x_list)

    # (NI, B, NP, C*p*p) — patch-embed GEMM + pos/type adds fused in one kernel.
    x_stack = jnp.stack([extract_patches(x, p) for x in x_list], axis=0)
    e = pallas_patch_embed(x_stack, params['pe_w'], params['pe_b'],
                           params['pos_embed'], params['img_type_embed'])
    x = e.transpose(1, 0, 2, 3).reshape(B, NI * NP, E)   # concat over seq

    # PyTorch permutes to (S, B, E); attention is per-batch so (B, S, E) is
    # mathematically identical.  Whole depth runs inside one pallas_call.
    x = pallas_transformer(x, params['layers'], nh)

    x = x[:, :NP, :]
    out = pallas_linear(x.reshape(B * NP, E), params['op_w'], params['op_b'])
    out = out.reshape(B, H // p, W // p, p, p, C)
    out = out.transpose(0, 5, 1, 3, 2, 4)      # (B, C, H/p, p, W/p, p)
    return out.reshape(B, C, H, W)


# --------------------------- reference (pure JAX) ----------------------------

def ref_forward(x_list, params, cfg):
    p, E, nh = cfg['patch_size'], cfg['embed_dim'], cfg['num_heads']
    B, C, H, W = x_list[0].shape
    NP = (H // p) * (W // p)
    hd = E // nh
    scale = 1.0 / math.sqrt(hd)

    embeds = []
    for i, x in enumerate(x_list):
        pt = extract_patches(x, p).reshape(B * NP, C * p * p)
        e = (pt @ params['pe_w'] + params['pe_b']).reshape(B, NP, E)
        e = e + params['pos_embed'] + params['img_type_embed'][i]
        embeds.append(e)
    x = jnp.concatenate(embeds, axis=1)                       # (B, S, E)

    L = params['layers']
    depth = L['wqkv'].shape[0]
    for d in range(depth):
        qkv = x @ L['wqkv'][d] + L['bqkv'][d]                 # (B, S, 3E)
        q, k, v = qkv[..., :E] * scale, qkv[..., E:2 * E], qkv[..., 2 * E:]
        heads = []
        for h in range(nh):
            sl = slice(h * hd, (h + 1) * hd)
            s = jnp.einsum('bqd,bkd->bqk', q[..., sl], k[..., sl])
            pr = jax.nn.softmax(s, axis=-1)
            heads.append(jnp.einsum('bqk,bkd->bqd', pr, v[..., sl]))
        attn = jnp.concatenate(heads, axis=-1) @ L['wo'][d] + L['bo'][d]

        def ln(y, w, b):
            mu = y.mean(-1, keepdims=True)
            var = ((y - mu) ** 2).mean(-1, keepdims=True)
            return (y - mu) * jax.lax.rsqrt(var + 1e-5) * w + b

        h1 = ln(x + attn, L['ln1w'][d], L['ln1b'][d])
        f = jax.nn.relu(h1 @ L['w1'][d] + L['b1'][d]) @ L['w2'][d] + L['b2'][d]
        x = ln(h1 + f, L['ln2w'][d], L['ln2b'][d])

    x = x[:, :NP, :]
    out = x.reshape(B * NP, E) @ params['op_w'] + params['op_b']
    out = out.reshape(B, H // p, W // p, p, p, C)
    return out.transpose(0, 5, 1, 3, 2, 4).reshape(B, C, H, W)


# ----------------------------------- params ----------------------------------

def init_params(key, cfg):
    p, C, E = cfg['patch_size'], cfg['in_channels'], cfg['embed_dim']
    F = E * cfg['mlp_ratio']
    NP = (cfg['img_size'] // p) ** 2
    NI, D = cfg['num_images'], cfg['depth']
    keys = iter(jax.random.split(key, 16))

    def nrm(shape, scale=0.02):
        return (scale * jax.random.normal(next(keys), shape)).astype(jnp.float32)

    return {
        'pe_w': nrm((C * p * p, E)),            # Conv2d weight, pre-flattened/T
        'pe_b': nrm((1, E)),
        'pos_embed': nrm((1, NP, E)),           # synthetic init (torch uses zeros)
        'img_type_embed': nrm((NI, 1, E)),
        'op_w': nrm((E, p * p * C)),
        'op_b': nrm((1, p * p * C)),
        'layers': {                             # stacked along leading layer axis
            'wqkv': nrm((D, E, 3 * E)), 'bqkv': nrm((D, 1, 3 * E)),
            'wo': nrm((D, E, E)),       'bo': nrm((D, 1, E)),
            'ln1w': jnp.ones((D, 1, E), jnp.float32),
            'ln1b': jnp.zeros((D, 1, E), jnp.float32),
            'w1': nrm((D, E, F)),       'b1': nrm((D, 1, F)),
            'w2': nrm((D, F, E)),       'b2': nrm((D, 1, E)),
            'ln2w': jnp.ones((D, 1, E), jnp.float32),
            'ln2b': jnp.zeros((D, 1, E), jnp.float32),
        },
    }


# ----------------------------------- main ------------------------------------

if __name__ == "__main__":
    cfg = dict(img_size=16, patch_size=4, in_channels=3, num_images=2,
               embed_dim=32, depth=2, num_heads=4, mlp_ratio=4)
    B = 2

    key = jax.random.PRNGKey(0)
    kx, kp = jax.random.split(key)
    x_list = [jax.random.normal(k, (B, cfg['in_channels'],
                                    cfg['img_size'], cfg['img_size']),
                                dtype=jnp.float32)
              for k in jax.random.split(kx, cfg['num_images'])]
    params = init_params(kp, cfg)

    out = image_transformer_forward(x_list, params, cfg)
    out = jax.block_until_ready(out)

    ref = ref_forward(x_list, params, cfg)

    assert out.shape == (B, cfg['in_channels'], cfg['img_size'], cfg['img_size'])
    err = float(jnp.max(jnp.abs(out - ref)))
    assert jnp.allclose(out, ref, atol=1e-4, rtol=1e-4), f"max abs err {err}"
    print("KERNEL_OK")
</pallas_src>

<mosaic_0001>
module attributes {stable_mosaic.version = 11 : i64} {
  func.func @_embed_kernel(%arg0: i32, %arg1: memref<1x2x16x48xf32, #tpu.memory_space<vmem>>, %arg2: memref<48x32xf32, #tpu.memory_space<vmem>>, %arg3: memref<1x32xf32, #tpu.memory_space<vmem>>, %arg4: memref<1x16x32xf32, #tpu.memory_space<vmem>>, %arg5: memref<1x1x32xf32, #tpu.memory_space<vmem>>, %arg6: memref<1x2x16x32xf32, #tpu.memory_space<vmem>>) attributes {dimension_semantics = [#tpu.dimension_semantics<parallel>], iteration_bounds = array<i64: 2>, scalar_prefetch = 0 : i64, scratch_operands = 0 : i64, tpu.core_type = #tpu.core_type<tc>, window_params = [{transform_indices = @transform_0, window_bounds = array<i64: 1, 2, 16, 48>}, {pipeline_mode = #tpu.pipeline_mode<synchronous>, transform_indices = @transform_1, window_bounds = array<i64: 48, 32>}, {pipeline_mode = #tpu.pipeline_mode<synchronous>, transform_indices = @transform_2, window_bounds = array<i64: 1, 32>}, {pipeline_mode = #tpu.pipeline_mode<synchronous>, transform_indices = @transform_3, window_bounds = array<i64: 1, 16, 32>}, {transform_indices = @transform_4, window_bounds = array<i64: 1, 1, 32>}, {transform_indices = @transform_5, window_bounds = array<i64: 1, 2, 16, 32>}]} {
    %c0 = arith.constant 0 : index
    %c0_0 = arith.constant 0 : index
    %c0_1 = arith.constant 0 : index
    %c0_2 = arith.constant 0 : index
    %0 = vector.load %arg1[%c0, %c0_0, %c0_1, %c0_2] : memref<1x2x16x48xf32, #tpu.memory_space<vmem>>, vector<1x2x16x48xf32>
    %1 = vector.shape_cast %0 : vector<1x2x16x48xf32> to vector<2x16x48xf32>
    %2 = vector.shape_cast %1 : vector<2x16x48xf32> to vector<32x48xf32>
    %c0_3 = arith.constant 0 : index
    %c0_4 = arith.constant 0 : index
    %3 = vector.load %arg2[%c0_3, %c0_4] : memref<48x32xf32, #tpu.memory_space<vmem>>, vector<48x32xf32>
    %cst = arith.constant dense<0.000000e+00> : vector<32x32xf32>
    %4 = tpu.matmul %2, %3, %cst {dimension_numbers = #tpu.dot_dimension_numbers<[1], [0], [0], [1], [0, 0, 1, 1], [], []>} : vector<32x48xf32>, vector<48x32xf32>, vector<32x32xf32> -> vector<32x32xf32>
    %5 = vector.shape_cast %4 : vector<32x32xf32> to vector<2x16x32xf32>
    %c0_5 = arith.constant 0 : index
    %c0_6 = arith.constant 0 : index
    %6 = vector.load %arg3[%c0_5, %c0_6] : memref<1x32xf32, #tpu.memory_space<vmem>>, vector<1x32xf32>
    %7 = vector.shape_cast %6 : vector<1x32xf32> to vector<1x1x32xf32>
    %8 = vector.broadcast %7 : vector<1x1x32xf32> to vector<2x16x32xf32>
    %9 = arith.addf %5, %8 : vector<2x16x32xf32>
    %c0_7 = arith.constant 0 : index
    %c0_8 = arith.constant 0 : index
    %c0_9 = arith.constant 0 : index
    %10 = vector.load %arg4[%c0_7, %c0_8, %c0_9] : memref<1x16x32xf32, #tpu.memory_space<vmem>>, vector<1x16x32xf32>
    %11 = vector.shape_cast %10 : vector<1x16x32xf32> to vector<16x32xf32>
    %12 = vector.shape_cast %11 : vector<16x32xf32> to vector<1x16x32xf32>
    %13 = vector.broadcast %12 : vector<1x16x32xf32> to vector<2x16x32xf32>
    %14 = arith.addf %9, %13 : vector<2x16x32xf32>
    %c0_10 = arith.constant 0 : index
    %c0_11 = arith.constant 0 : index
    %c0_12 = arith.constant 0 : index
    %15 = vector.load %arg5[%c0_10, %c0_11, %c0_12] : memref<1x1x32xf32, #tpu.memory_space<vmem>>, vector<1x1x32xf32>
    %16 = vector.shape_cast %15 : vector<1x1x32xf32> to vector<1x32xf32>
    %17 = vector.shape_cast %16 : vector<1x32xf32> to vector<1x1x32xf32>
    %18 = vector.broadcast %17 : vector<1x1x32xf32> to vector<2x16x32xf32>
    %19 = arith.addf %14, %18 : vector<2x16x32xf32>
    %c0_13 = arith.constant 0 : index
    %c0_14 = arith.constant 0 : index
    %c0_15 = arith.constant 0 : index
    %c0_16 = arith.constant 0 : index
    %20 = vector.load %arg6[%c0_13, %c0_14, %c0_15, %c0_16] : memref<1x2x16x32xf32, #tpu.memory_space<vmem>>, vector<1x2x16x32xf32>
    %21 = vector.shape_cast %20 : vector<1x2x16x32xf32> to vector<2x16x32xf32>
    %22 = vector.shape_cast %19 : vector<2x16x32xf32> to vector<1x2x16x32xf32>
    tpu.vector_store %arg6[%c0_13, %c0_14, %c0_15, %c0_16], %22 {strides = array<i32>} : memref<1x2x16x32xf32, #tpu.memory_space<vmem>>, vector<1x2x16x32xf32>,
    return
  }
  func.func @transform_0(%arg0: i32) -> (i32, i32, i32, i32) {
    %c0_i32 = arith.constant 0 : i32
    %c0_i32_0 = arith.constant 0 : i32
    %c0_i32_1 = arith.constant 0 : i32
    %c0_i32_2 = arith.constant 0 : i32
    return %arg0, %c0_i32, %c0_i32_0, %c0_i32_1 : i32, i32, i32, i32
  }
  func.func @transform_1(%arg0: i32) -> (i32, i32) {
    %c0_i32 = arith.constant 0 : i32
    %c0_i32_0 = arith.constant 0 : i32
    %c0_i32_1 = arith.constant 0 : i32
    return %c0_i32, %c0_i32_0 : i32, i32
  }
  func.func @transform_2(%arg0: i32) -> (i32, i32) {
    %c0_i32 = arith.constant 0 : i32
    %c0_i32_0 = arith.constant 0 : i32
    %c0_i32_1 = arith.constant 0 : i32
    return %c0_i32, %c0_i32_0 : i32, i32
  }
  func.func @transform_3(%arg0: i32) -> (i32, i32, i32) {
    %c0_i32 = arith.constant 0 : i32
    %c0_i32_0 = arith.constant 0 : i32
    %c0_i32_1 = arith.constant 0 : i32
    %c0_i32_2 = arith.constant 0 : i32
    return %c0_i32, %c0_i32_0, %c0_i32_1 : i32, i32, i32
  }
  func.func @transform_4(%arg0: i32) -> (i32, i32, i32) {
    %c0_i32 = arith.constant 0 : i32
    %c0_i32_0 = arith.constant 0 : i32
    %c0_i32_1 = arith.constant 0 : i32
    return %arg0, %c0_i32, %c0_i32_0 : i32, i32, i32
  }
  func.func @transform_5(%arg0: i32) -> (i32, i32, i32, i32) {
    %c0_i32 = arith.constant 0 : i32
    %c0_i32_0 = arith.constant 0 : i32
    %c0_i32_1 = arith.constant 0 : i32
    %c0_i32_2 = arith.constant 0 : i32
    return %arg0, %c0_i32, %c0_i32_0, %c0_i32_1 : i32, i32, i32, i32
  }
}

</mosaic_0001>

<llo_original>
// kernel: tpu_custom_call.1
$region0: #{tpu_custom_call.1}
  #allocation0 [shape = 'u32[]', space=smem, size = 0x4, offset = 0x4, fixed_abs, tag = 'smem constant byte address 0x4 - core index']
  #allocation1 [shape = 'u32[144,128]{1,0:T(1,128)}', space=vmem, size = 0x12000, scoped, tag = 'internal scratch']
  %s0 = inlined_call_operand.vmem [shape: f32[2,2,16,48], index: 0, kind: input, shape index: {}]
  %s1 = inlined_call_operand.vmem [shape: f32[48,32], index: 1, kind: input, shape index: {}]
  %s2 = inlined_call_operand.vmem [shape: f32[1,32], index: 2, kind: input, shape index: {}]
  %s3 = inlined_call_operand.vmem [shape: f32[1,16,32], index: 3, kind: input, shape index: {}]
  %s4 = inlined_call_operand.vmem [shape: f32[2,1,32], index: 4, kind: input, shape index: {}]
  %s5 = inlined_call_operand.hbm [shape: f32[2,2,16,32], index: 5, kind: output, shape index: {}]
  %s6 = sld [smem:[#allocation0]]
  $region53: #{tpu_custom_call.1} parent=0
    _
  %s8 = ssub.s32 1, %s6
  %s9 = scalar_select 0, %s8, %s6
  $region1: #{tpu_custom_call.1} parent=0
    #allocation2 [shape = 'u8[32768]{0}', space=vmem, size = 0x8000, scoped, tag = 'output window, operand 0']
    #allocation3 [shape = 's32[2]{0}', space=sflag, size = 0x8, scoped, tag = 'scoped memory for tpu_custom_call.1']
    %10 = vsyncpa [#allocation3], 0
    %s11 = scalar_lea.sflag [#allocation3], 1
    %12 = vsyncpa %s11, 0
    loop: start=0, step=1, limit=4
    $region2: #{tpu_custom_call.1} parent=1 // loop_pre_header
      _
    $region3: #{tpu_custom_call.1} parent=1 // loop_header
      %s14 = sphi 0, %s18
      %p15 = scmp.ge.s32.totalorder %s14, 4
      %s24 = sphi 0, %s26
      %s27 = sphi 0, %s24
      %s28 = sphi 0, %s27
      %s44 = sphi 0, %s28
      %s48 = sphi 0, %s48
      %s50 = sphi 0, %s48
      %s51 = sphi 0, %s50
      %s65 = sphi 0, %s51
      %s69 = sphi 0, %s69
      %s71 = sphi 0, %s69
      %s72 = sphi 0, %s71
      %s86 = sphi 0, %s72
      %s90 = sphi 0, %s90
      %s92 = sphi 0, %s90
      %s93 = sphi 0, %s92
      %s107 = sphi 0, %s93
      %s113 = sphi 0, %s115
      %s116 = sphi 0, %s113
      %s117 = sphi 0, %s116
      %s133 = sphi 0, %s117
      %s139 = sphi 0, %s141
      %s142 = sphi 0, %s139
      %s143 = sphi 0, %s142
      %s159 = sphi 0, %s143
    $region4: #{tpu_custom_call.1} parent=1 // loop_header_branch
      %17 = sbr.rel (%p15) target = $region8
    $region5: #{tpu_custom_call.1} parent=1 // loop_body
      %s19 = ssub.s32 %s14, 1
      %s20 = ssub.s32 %s14, 2
      %s21 = sadd.s32 %s14, 1
      %s22 = ssub.s32 %s14, %s21
      %p23 = scmp.eq.s32.totalorder %s22, 0
      %s25 = sadd.s32 %s24, 1
      %s26 = scalar_select %p23, %s24, %s25
      %p29 = pneg %p23
      %p30 = scmp.eq.s32.totalorder %s14, 1
      %p31 = por %p29, %p30
      %p32 = scmp.ne.s32.totalorder %s24, %s27
      %p33 = scmp.eq.s32.totalorder %s14, 0
      %p34 = por %p32, %p33
      %p35 = scmp.ne.s32.totalorder %s24, %s27
      %p36 = scmp.eq.s32.totalorder %s19, 1
      %p37 = por %p35, %p36
      %p38 = scmp.ne.s32.totalorder %s27, %s28
      %p39 = scmp.eq.s32.totalorder %s19, 0
      %p40 = por %p38, %p39
      %p41 = scmp.ne.s32.totalorder %s27, %s28
      %p42 = scmp.eq.s32.totalorder %s20, 1
      %p43 = por %p41, %p42
      %p45 = scmp.ne.s32.totalorder %s28, %s44
      %p46 = scmp.eq.s32.totalorder %s20, 0
      %p47 = por %p45, %p46
      %s49 = sadd.s32 %s48, 1
      %p52 = scmp.eq.s32.totalorder %s14, 1
      %p53 = scmp.ne.s32.totalorder %s48, %s50
      %p54 = scmp.eq.s32.totalorder %s14, 0
      %p55 = por %p53, %p54
      %p56 = scmp.ne.s32.totalorder %s48, %s50
      %p57 = scmp.eq.s32.totalorder %s19, 1
      %p58 = por %p56, %p57
      %p59 = scmp.ne.s32.totalorder %s50, %s51
      %p60 = scmp.eq.s32.totalorder %s19, 0
      %p61 = por %p59, %p60
      %p62 = scmp.ne.s32.totalorder %s50, %s51
      %p63 = scmp.eq.s32.totalorder %s20, 1
      %p64 = por %p62, %p63
      %p66 = scmp.ne.s32.totalorder %s51, %s65
      %p67 = scmp.eq.s32.totalorder %s20, 0
      %p68 = por %p66, %p67
      %s70 = sadd.s32 %s69, 1
      %p73 = scmp.eq.s32.totalorder %s14, 1
      %p74 = scmp.ne.s32.totalorder %s69, %s71
      %p75 = scmp.eq.s32.totalorder %s14, 0
      %p76 = por %p74, %p75
      %p77 = scmp.ne.s32.totalorder %s69, %s71
      %p78 = scmp.eq.s32.totalorder %s19, 1
      %p79 = por %p77, %p78
      %p80 = scmp.ne.s32.totalorder %s71, %s72
      %p81 = scmp.eq.s32.totalorder %s19, 0
      %p82 = por %p80, %p81
      %p83 = scmp.ne.s32.totalorder %s71, %s72
      %p84 = scmp.eq.s32.totalorder %s20, 1
      %p85 = por %p83, %p84
      %p87 = scmp.ne.s32.totalorder %s72, %s86
      %p88 = scmp.eq.s32.totalorder %s20, 0
      %p89 = por %p87, %p88
      %s91 = sadd.s32 %s90, 1
      %p94 = scmp.eq.s32.totalorder %s14, 1
      %p95 = scmp.ne.s32.totalorder %s90, %s92
      %p96 = scmp.eq.s32.totalorder %s14, 0
      %p97 = por %p95, %p96
      %p98 = scmp.ne.s32.totalorder %s90, %s92
      %p99 = scmp.eq.s32.totalorder %s19, 1
      %p100 = por %p98, %p99
      %p101 = scmp.ne.s32.totalorder %s92, %s93
      %p102 = scmp.eq.s32.totalorder %s19, 0
      %p103 = por %p101, %p102
      %p104 = scmp.ne.s32.totalorder %s92, %s93
      %p105 = scmp.eq.s32.totalorder %s20, 1
      %p106 = por %p104, %p105
      %p108 = scmp.ne.s32.totalorder %s93, %s107
      %p109 = scmp.eq.s32.totalorder %s20, 0
      %p110 = por %p108, %p109
      %s111 = ssub.s32 %s14, %s21
      %p112 = scmp.eq.s32.totalorder %s111, 0
      %s114 = sadd.s32 %s113, 1
      %s115 = scalar_select %p112, %s113, %s114
      %p118 = pneg %p112
      %p119 = scmp.eq.s32.totalorder %s14, 1
      %p120 = por %p118, %p119
      %p121 = scmp.ne.s32.totalorder %s113, %s116
      %p122 = scmp.eq.s32.totalorder %s14, 0
      %p123 = por %p121, %p122
      %p124 = scmp.ne.s32.totalorder %s113, %s116
      %p125 = scmp.eq.s32.totalorder %s19, 1
      %p126 = por %p124, %p125
      %p127 = scmp.ne.s32.totalorder %s116, %s117
      %p128 = scmp.eq.s32.totalorder %s19, 0
      %p129 = por %p127, %p128
      %p130 = scmp.ne.s32.totalorder %s116, %s117
      %p131 = scmp.eq.s32.totalorder %s20, 1
      %p132 = por %p130, %p131
      %p134 = scmp.ne.s32.totalorder %s117, %s133
      %p135 = scmp.eq.s32.totalorder %s20, 0
      %p136 = por %p134, %p135
      %s137 = ssub.s32 %s14, %s21
      %p138 = scmp.eq.s32.totalorder %s137, 0
      %s140 = sadd.s32 %s139, 1
      %s141 = scalar_select %p138, %s139, %s140
      %p144 = pneg %p138
      %p145 = scmp.eq.s32.totalorder %s14, 1
      %p146 = por %p144, %p145
      %p147 = scmp.ne.s32.totalorder %s139, %s142
      %p148 = scmp.eq.s32.totalorder %s14, 0
      %p149 = por %p147, %p148
      %p150 = scmp.ne.s32.totalorder %s139, %s142
      %p151 = scmp.eq.s32.totalorder %s19, 1
      %p152 = por %p150, %p151
      %p153 = scmp.ne.s32.totalorder %s142, %s143
      %p154 = scmp.eq.s32.totalorder %s19, 0
      %p155 = por %p153, %p154
      %p156 = scmp.ne.s32.totalorder %s142, %s143
      %p157 = scmp.eq.s32.totalorder %s20, 1
      %p158 = por %p156, %p157
      %p160 = scmp.ne.s32.totalorder %s143, %s159
      %p161 = scmp.eq.s32.totalorder %s20, 0
      %p162 = por %p160, %p161
      %p163 = scmp.le.s32.totalorder 1, %s14
      %p164 = scmp.lt.s32.totalorder %s14, 3
      %p165 = pnand %p163, %p164
      %p166 = pneg %p165
      // Predicated region
      $region9: #{tpu_custom_call.1} parent=5 // pred_check
        _
      $region10: #{tpu_custom_call.1} parent=5 // pred_check_branch
        %168 = sbr.rel (%p165) target = $region12
      $region11: #{tpu_custom_call.1} parent=5 // pred_region
        %s169 = ssub.s32 %s14, 1
        // Predicated region
        $region13: #{tpu_custom_call.1} parent=11 // pred_check
          %p170 = pneg %p61
        $region14: #{tpu_custom_call.1} parent=11 // pred_check_branch
          %172 = sbr.rel (%p170) target = $region16
        $region15: #{tpu_custom_call.1} parent=11 // pred_region
          _
        $region16: #{tpu_custom_call.1} parent=11 // pred_fallthru
          _
        // Predicated region
        $region17: #{tpu_custom_call.1} parent=11 // pred_check
          %p173 = pneg %p82
        $region18: #{tpu_custom_call.1} parent=11 // pred_check_branch
          %175 = sbr.rel (%p173) target = $region20
        $region19: #{tpu_custom_call.1} parent=11 // pred_region
          _
        $region20: #{tpu_custom_call.1} parent=11 // pred_fallthru
          _
        // Predicated region
        $region21: #{tpu_custom_call.1} parent=11 // pred_check
          %p176 = pneg %p103
        $region22: #{tpu_custom_call.1} parent=11 // pred_check_branch
          %178 = sbr.rel (%p176) target = $region24
        $region23: #{tpu_custom_call.1} parent=11 // pred_region
          _
        $region24: #{tpu_custom_call.1} parent=11 // pred_fallthru
          _
      $region12: #{tpu_custom_call.1} parent=5 // pred_fallthru
        _
      %p179 = scmp.lt.s32.totalorder %s14, 2
      // Predicated region
      $region25: #{tpu_custom_call.1} parent=5 // pred_check
        %p180 = pneg %p179
      $region26: #{tpu_custom_call.1} parent=5 // pred_check_branch
        %182 = sbr.rel (%p180) target = $region28
      $region27: #{tpu_custom_call.1} parent=5 // pred_region
        // Predicated region
        $region29: #{tpu_custom_call.1} parent=27 // pred_check
          %p183 = pneg %p34
        $region30: #{tpu_custom_call.1} parent=27 // pred_check_branch
          %185 = sbr.rel (%p183) target = $region32
        $region31: #{tpu_custom_call.1} parent=27 // pred_region
          %p186 = scmp.lt.s32.totalorder %s14, 1
          %s187 = scalar_select %p186, %s14, 1
          %s188 = smul.addr %s187, 4
          %s189 = smul.addr %s188, 8
          %s190 = scalar_lea.vmem %s0, %s189
        $region32: #{tpu_custom_call.1} parent=27 // pred_fallthru
          _
        // Predicated region
        $region33: #{tpu_custom_call.1} parent=27 // pred_check
          %p191 = pneg %p123
        $region34: #{tpu_custom_call.1} parent=27 // pred_check_branch
          %193 = sbr.rel (%p191) target = $region36
        $region35: #{tpu_custom_call.1} parent=27 // pred_region
          %p194 = scmp.lt.s32.totalorder %s14, 1
          %s195 = scalar_select %p194, %s14, 1
          %s196 = scalar_lea.vmem %s4, %s195
        $region36: #{tpu_custom_call.1} parent=27 // pred_fallthru
          _
      $region28: #{tpu_custom_call.1} parent=5 // pred_fallthru
        _
      %p197 = scmp.le.s32.totalorder 1, %s14
      %p198 = scmp.lt.s32.totalorder %s14, 3
      %p199 = pnand %p197, %p198
      %p200 = pneg %p199
      // Predicated region
      $region37: #{tpu_custom_call.1} parent=5 // pred_check
        _
      $region38: #{tpu_custom_call.1} parent=5 // pred_check_branch
        %202 = sbr.rel (%p199) target = $region40
      $region39: #{tpu_custom_call.1} parent=5 // pred_region
        %s203 = ssub.s32 %s14, 1
        %p204 = scmp.lt.s32.totalorder %s19, 1
        %s205 = scalar_select %p204, %s19, 1
        %s206 = smul.addr %s205, 4
        %s207 = smul.addr %s206, 8
        %s208 = scalar_lea.vmem %s0, %s207
        %p209 = pneg %p40
        %p210 = pneg %p37
        %p211 = pneg %p61
        %p212 = pneg %p58
        %p213 = pneg %p82
        %p214 = pneg %p79
        %p215 = pneg %p103
        %p216 = pneg %p100
        %p217 = scmp.lt.s32.totalorder %s19, 1
        %s218 = scalar_select %p217, %s19, 1
        %s219 = scalar_lea.vmem %s4, %s218
        %p220 = pneg %p129
        %p221 = pneg %p126
        %p222 = pneg %p155
        %p223 = pneg %p152
        %s224 = sand.u32 %s142, 1
        %s225 = scalar_lea.sflag [#allocation3], %s224
        %s226 = sand.u32 %s142, 1
        %s227 = smul.addr %s226, 32
        %s228 = scalar_lea.vmem [#allocation2], %s227
        %p229 = scmp.lt.s32.totalorder %s19, 1
        %s230 = scalar_select %p229, %s19, 1
        %s231 = smul.addr %s230, 4
        %s232 = smul.addr %s231, 8
        %s233 = scalar_lea.vmem %s0, %s232
        %p234 = scmp.lt.s32.totalorder %s19, 1
        %s235 = scalar_select %p234, %s19, 1
        %s236 = scalar_lea.vmem %s4, %s235
        %v237 = vld [vmem:[%s233] sm:$0xff]
        %v238 = vld [vmem:[%s233 + $0x8] sm:$0xff]
        %v239 = vld [vmem:[%s233 + $0x10] sm:$0xff]
        %v240 = vld [vmem:[%s233 + $0x18] sm:$0xff]
        %v241 = vld [vmem:[%s1] sm:$0xff]
        %v242 = vld [vmem:[%s1 + $0x8] sm:$0xff]
        %v243 = vld [vmem:[%s1 + $0x10] sm:$0xff]
        %v244 = vld [vmem:[%s1 + $0x18] sm:$0xff]
        %v245 = vld [vmem:[%s1 + $0x20] sm:$0xff]
        %v246 = vld [vmem:[%s1 + $0x28] sm:$0xff]
        %vm247 = vcmask 392192
        %v249 = vsel %vm247, %v237, 0
        %v252 = vsel %vm247, %v238, 0
        %v255 = vsel %vm247, %v239, 0
        %v258 = vsel %vm247, %v240, 0
        %260 = vmatprep.subr.mxu0 0.0
        %261 = vmatpush1.msra.mxu0 0.0
        %262 = vmatprep.subr.mxu0 0.0
        %263 = vmatpush1.msra.mxu0 0.0
        %264 = vmatprep.subr.mxu0 0.0
        %265 = vmatpush1.msra.mxu0 0.0
        %266 = vmatprep.subr.mxu0 0.0
        %267 = vmatpush1.msra.mxu0 0.0
        %268 = vmatprep.subr.mxu0 0.0
        %269 = vmatpush1.msra.mxu0 0.0
        %270 = vmatprep.subr.mxu0 0.0
        %271 = vmatpush1.msra.mxu0 0.0
        %272 = vmatprep.subr.mxu0 0.0
        %273 = vmatpush1.msra.mxu0 0.0
        %274 = vmatprep.subr.mxu0 0.0
        %275 = vmatpush1.msra.mxu0 0.0
        %276 = vmatprep.subr.mxu0 0.0
        %277 = vmatpush1.msra.mxu0 0.0
        %278 = vmatprep.subr.mxu0 0.0
        %279 = vmatpush1.msra.mxu0 0.0
        %280 = vmatprep.subr.mxu0 0.0
        %281 = vmatpush1.msra.mxu0 %v246
        %282 = vmatprep.subr.mxu0 0.0
        %283 = vmatpush1.msra.mxu0 %v245
        %284 = vmatprep.subr.mxu0 0.0
        %285 = vmatpush1.msra.mxu0 %v244
        %286 = vmatprep.subr.mxu0 0.0
        %287 = vmatpush1.msra.mxu0 %v243
        %288 = vmatprep.subr.mxu0 0.0
        %289 = vmatpush1.msra.mxu0 %v242
        %290 = vmatprep.subr.mxu0 0.0
        %291 = vmatpush1.msra.mxu0 %v241
        %292 = vmatprep.subr.mxu0 0.0
        %293 = vmatpush2.msra.mxu0 0.0
        %294 = vmatprep.subr.mxu0 0.0
        %295 = vmatpush2.msra.mxu0 0.0
        %296 = vmatprep.subr.mxu0 0.0
        %297 = vmatpush2.msra.mxu0 0.0
        %298 = vmatprep.subr.mxu0 0.0
        %299 = vmatpush2.msra.mxu0 0.0
        %300 = vmatprep.subr.mxu0 0.0
        %301 = vmatpush2.msra.mxu0 0.0
        %302 = vmatprep.subr.mxu0 0.0
        %303 = vmatpush2.msra.mxu0 0.0
        %304 = vmatprep.subr.mxu0 0.0
        %305 = vmatpush2.msra.mxu0 0.0
        %306 = vmatprep.subr.mxu0 0.0
        %307 = vmatpush2.msra.mxu0 0.0
        %308 = vmatprep.subr.mxu0 0.0
        %309 = vmatpush2.msra.mxu0 0.0
        %310 = vmatprep.subr.mxu0 0.0
        %311 = vmatpush2.msra.mxu0 0.0
        %312 = vmatprep.subr.mxu0 0.0
        %313 = vmatpush2.msra.mxu0 0.0
        %314 = vmatprep.subr.mxu0 0.0
        %315 = vmatpush2.msra.mxu0 0.0
        %316 = vmatprep.subr.mxu0 0.0
        %317 = vmatpush2.msra.mxu0 0.0
        %318 = vmatprep.subr.mxu0 0.0
        %319 = vmatpush2.msra.mxu0 0.0
        %320 = vmatprep.subr.mxu0 0.0
        %321 = vmatpush2.msra.mxu0 0.0
        %322 = vmatprep.subr.mxu0 0.0
        %323 = vmatpush2.msra.mxu0 0.0
        %324 = vmatprep.mubr.f32.mxu0 0.0
        %325 = vmatmul.mubr.f32.gmra.mxu0 %v249
        %v326 = vpop.f32.mrf.mxu0
        %v327 = vadd.f32 0.0, %v326
        %v328 = vpop.f32.mrf.mxu0
        %329 = vmatprep.mubr.f32.mxu0 0.0
        %330 = vmatmul.mubr.f32.gmra.mxu0 %v252
        %v331 = vpop.f32.mrf.mxu0
        %v332 = vadd.f32 0.0, %v331
        %v333 = vpop.f32.mrf.mxu0
        %334 = vmatprep.mubr.f32.mxu0 0.0
        %335 = vmatmul.mubr.f32.gmra.mxu0 %v255
        %v336 = vpop.f32.mrf.mxu0
        %v337 = vadd.f32 0.0, %v336
        %v338 = vpop.f32.mrf.mxu0
        %339 = vmatprep.mubr.f32.mxu0 0.0
        %340 = vmatmul.mubr.f32.gmra.mxu0 %v258
        %v341 = vpop.f32.mrf.mxu0
        %v342 = vadd.f32 0.0, %v341
        %v343 = vpop.f32.mrf.mxu0
        %344 = vdwg.mxu0
        %v345 = vld [vmem:[%s2] sm:$0x1]
        %v347 = vlaneseq
        %v348 = vshrl.u32 %v347, 7
        %v349 = vsub.s32 0, %v348
        %v350 = vrot.slane %v345, %v349
        %v352 = vadd.f32 %v327, %v350
        %v353 = vadd.f32 %v332, %v350
        %v354 = vadd.f32 %v337, %v350
        %v355 = vadd.f32 %v342, %v350
        %v356 = vld [vmem:[%s3] sm:$0xff]
        %v357 = vld [vmem:[%s3 + $0x8] sm:$0xff]
        %v358 = vadd.f32 %v352, %v356
        %v359 = vadd.f32 %v353, %v357
        %v360 = vadd.f32 %v354, %v356
        %v361 = vadd.f32 %v355, %v357
        %v362 = vld [vmem:[%s236] sm:$0x1]
        %v364 = vlaneseq
        %v365 = vshrl.u32 %v364, 7
        %v366 = vsub.s32 0, %v365
        %v367 = vrot.slane %v362, %v366
        %v369 = vadd.f32 %v358, %v367
        %v370 = vadd.f32 %v359, %v367
        %v371 = vadd.f32 %v360, %v367
        %v372 = vadd.f32 %v361, %v367
        %vm373 = vcmask 261120
        %374 = vst.msk [vmem:[%s228] sm:$0xff] %vm373, %v369
        %375 = vst.msk [vmem:[%s228 + $0x8] sm:$0xff] %vm373, %v370
        %376 = vst.msk [vmem:[%s228 + $0x10] sm:$0xff] %vm373, %v371
        %377 = vst.msk [vmem:[%s228 + $0x18] sm:$0xff] %vm373, %v372
        %s378 = sand.u32 %s142, 1
        %s379 = scalar_lea.sflag [#allocation3], %s378
        %s380 = sand.u32 %s142, 1
        %s381 = smul.addr %s380, 32
        %s382 = scalar_lea.vmem [#allocation2], %s381
        // Predicated region
        $region41: #{tpu_custom_call.1} parent=39 // pred_check
          %p383 = pneg %p152
        $region42: #{tpu_custom_call.1} parent=39 // pred_check_branch
          %385 = sbr.rel (%p383) target = $region44
        $region43: #{tpu_custom_call.1} parent=39 // pred_region
          %s387 = ssub.s32 512, 512
          %388 = vsyncadd %s379, %s387
          %s389 = smul.addr %s19, 4
          %s390 = smul.addr %s389, 128
          %s391 = scalar_lea.hbm %s5, %s390
          %s392 = sshll.u32 %s382, 4
          %s393 = int_to_ptr.vmem [resolvable:$true] %s392
          %398 = dma.vmem_to_hbm [thread:$0]  %s393, 512, %s391, %s379, 128, 128, 8
        $region44: #{tpu_custom_call.1} parent=39 // pred_fallthru
          _
      $region40: #{tpu_custom_call.1} parent=5 // pred_fallthru
        _
      %p399 = scmp.le.s32.totalorder 2, %s14
      // Predicated region
      $region45: #{tpu_custom_call.1} parent=5 // pred_check
        %p400 = pneg %p399
      $region46: #{tpu_custom_call.1} parent=5 // pred_check_branch
        %402 = sbr.rel (%p400) target = $region48
      $region47: #{tpu_custom_call.1} parent=5 // pred_region
        %s403 = ssub.s32 %s14, 2
        // Predicated region
        $region49: #{tpu_custom_call.1} parent=47 // pred_check
          %p404 = pneg %p158
        $region50: #{tpu_custom_call.1} parent=47 // pred_check_branch
          %406 = sbr.rel (%p404) target = $region52
        $region51: #{tpu_custom_call.1} parent=47 // pred_region
          %s407 = sand.u32 %s143, 1
          %s408 = scalar_lea.sflag [#allocation3], %s407
          %s409 = sand.u32 %s143, 1
          %s410 = smul.addr %s409, 32
          %s411 = scalar_lea.vmem [#allocation2], %s410
          %412 = dma.done %s408, 512
        $region52: #{tpu_custom_call.1} parent=47 // pred_fallthru
          _
      $region48: #{tpu_custom_call.1} parent=5 // pred_fallthru
        _
    $region6: #{tpu_custom_call.1} parent=1 // loop_footer
      %s18 = sadd.s32 1, %s14
    $region7: #{tpu_custom_call.1} parent=1 // loop_footer_branch
      %13 = sbr.rel target = $region3
    $region8: #{tpu_custom_call.1} parent=1 // loop_exit
      _
    %413 = vsyncpa [#allocation3], 1
    %s414 = scalar_lea.sflag [#allocation3], 1
    %415 = vsyncpa %s414, 1

</llo_original>
